<compile_context>
chip_gen: v6e
topology: v6e:2x2x1
jax: 0.10.0
libtpu: 0.0.40
codegen_flags: <defaults>
</compile_context>

<pallas_src>
import numpy as np
import jax
import jax.numpy as jnp
from jax.experimental import pallas as pl
from jax.experimental.pallas import tpu as pltpu


# ----------------------------- tiling policy -----------------------------

_LANE = 128
_VMEM_BUDGET = 24 * 1024 * 1024   # per-step working-set budget (bytes), safe on v7x 64 MiB VMEM
_VMEM_LIMIT = 48 * 1024 * 1024    # scoped VMEM limit handed to Mosaic (raised vs 16/32 MiB defaults)
_BLOCKS_LIVE = 7                  # 2x(in) + 2x(out) double buffers + ~3 block-sized f32 temporaries
_MAX_TILE = 8192                  # keep per-step time bounded; >=1k lanes already hits ~86% of roofline


def _round_up(x, m):
    return ((x + m - 1) // m) * m


def _round_down(x, m):
    return (x // m) * m


def _choose_tiling(B, C, HW):
    """Return (Bt, tile, HW_pad): tile is a multiple of 128 dividing HW_pad, Bt divides B."""
    HW_pad = _round_up(max(HW, _LANE), _LANE)
    bytes_per_lane = _BLOCKS_LIVE * 4 * C          # per spatial token, Bt = 1, f32 math
    tile = _round_down(max(_LANE, _VMEM_BUDGET // bytes_per_lane), _LANE)
    tile = max(_LANE, min(tile, _MAX_TILE, HW_pad))

    Bt = 1
    if tile >= HW_pad:
        # Whole spatial extent fits in one block -> fold batch elements in too.
        tile = HW_pad
        bt_max = max(1, _VMEM_BUDGET // (bytes_per_lane * tile))
        Bt = max(d for d in range(1, B + 1) if B % d == 0 and d <= bt_max)
        # Keep at least 2 grid steps along a parallel axis (v7x has 2 TensorCores).
        if B // Bt < 2:
            if B >= 2:
                Bt = max(d for d in range(1, B // 2 + 1) if B % d == 0)
            elif HW_pad >= 2 * _LANE:
                tile = _round_up(pl.cdiv(HW_pad, 2), _LANE)

    n_spatial = pl.cdiv(HW_pad, tile)
    HW_pad = n_spatial * tile                       # grid * tile exactly covers the padded array
    return Bt, tile, HW_pad


# ----------------------------- Pallas kernel -----------------------------

def _make_layernorm_kernel(eps, inv_c):
    def kernel(x_ref, g_ref, b_ref, o_ref):
        x = x_ref[...].astype(jnp.float32)                       # (Bt, C, T)
        mean = jnp.sum(x, axis=1, keepdims=True) * inv_c          # (Bt, 1, T)
        centered = x - mean
        var = jnp.sum(centered * centered, axis=1, keepdims=True) * inv_c
        std = jnp.sqrt(var)
        inv = pl.reciprocal(std + eps, approx=False)              # eps added to std (matches module)
        # (C, 1) affine params broadcast over batch (axis 0) and lanes (axis 2).
        out = centered * inv * g_ref[...] + b_ref[...]
        o_ref[...] = out.astype(o_ref.dtype)
    return kernel


# ----------------------------- wrapper -----------------------------

def layer_norm(x, g, b, eps=1e-5):
    """x: (B, C, H, W); g, b: (1, C, 1, 1) — PyTorch LayerNorm (over channels) semantics."""
    B, C, H, W = x.shape
    HW = H * W
    Bt, tile, HW_pad = _choose_tiling(B, C, HW)

    x3 = x.reshape(B, C, HW)                         # contiguous reshape, no transpose
    if HW_pad != HW:
        # Pad spatial axis so every output block is lane-dense (multiple of 128 wide).
        x3 = jnp.pad(x3, ((0, 0), (0, 0), (0, HW_pad - HW)))
    g2 = g.reshape(C, 1).astype(jnp.float32)
    b2 = b.reshape(C, 1).astype(jnp.float32)

    nbytes = x.dtype.itemsize
    cost = pl.CostEstimate(
        flops=8 * B * C * HW_pad,                    # subs/muls/adds for mean/var/normalize/affine
        transcendentals=2 * B * HW_pad,              # sqrt + reciprocal per spatial token
        bytes_accessed=(2 * B * C * HW_pad) * nbytes + 2 * C * 4,
    )

    grid = (B // Bt, HW_pad // tile)
    out = pl.pallas_call(
        _make_layernorm_kernel(eps, 1.0 / C),
        grid=grid,
        in_specs=[
            pl.BlockSpec((Bt, C, tile), lambda i, j: (i, 0, j)),
            pl.BlockSpec((C, 1), lambda i, j: (0, 0)),
            pl.BlockSpec((C, 1), lambda i, j: (0, 0)),
        ],
        out_specs=pl.BlockSpec((Bt, C, tile), lambda i, j: (i, 0, j)),
        out_shape=jax.ShapeDtypeStruct((B, C, HW_pad), x.dtype),
        compiler_params=pltpu.CompilerParams(
            dimension_semantics=("parallel", "parallel"),
            vmem_limit_bytes=_VMEM_LIMIT,
        ),
        cost_estimate=cost,
    )(x3, g2, b2)

    if HW_pad != HW:
        out = out[:, :, :HW]
    return out.reshape(B, C, H, W)


# ----------------------------- pure-JAX reference -----------------------------

def reference_layer_norm(x, g, b, eps=1e-5):
    mean = jnp.mean(x, axis=1, keepdims=True)
    var = jnp.mean((x - mean) ** 2, axis=1, keepdims=True)       # unbiased=False
    return (x - mean) / (jnp.sqrt(var) + eps) * g + b


# ----------------------------- main -----------------------------

if __name__ == "__main__":
    B, dim, H, W = 2, 32, 16, 16
    eps = 1e-5

    key = jax.random.PRNGKey(0)
    kx, kg, kb = jax.random.split(key, 3)
    x = jax.random.normal(kx, (B, dim, H, W), jnp.float32)
    # Module initializes g=ones, b=zeros; use non-trivial affine params so the test is meaningful.
    g = 1.0 + 0.1 * jax.random.normal(kg, (1, dim, 1, 1), jnp.float32)
    b = 0.1 * jax.random.normal(kb, (1, dim, 1, 1), jnp.float32)

    y = jax.block_until_ready(layer_norm(x, g, b, eps))
    y_ref = jax.block_until_ready(reference_layer_norm(x, g, b, eps))

    assert y.shape == (B, dim, H, W)
    assert np.allclose(np.asarray(y), np.asarray(y_ref), rtol=1e-4, atol=1e-5), \
        "Pallas LayerNorm mismatch vs reference"

    # Exercise a non-128-multiple spatial size (lane-padding path) as well.
    x2 = jax.random.normal(kx, (1, dim, 7, 9), jnp.float32)       # HW = 63 -> padded to 128
    y2 = jax.block_until_ready(layer_norm(x2, g, b, eps))
    y2_ref = reference_layer_norm(x2, g, b, eps)
    assert np.allclose(np.asarray(y2), np.asarray(y2_ref), rtol=1e-4, atol=1e-5), \
        "Pallas LayerNorm mismatch vs reference (padded spatial path)"

    print("KERNEL_OK")
</pallas_src>

<mosaic_0001>
module attributes {stable_mosaic.version = 11 : i64} {
  func.func @kernel(%arg0: i32, %arg1: i32, %arg2: memref<1x32x256xf32, #tpu.memory_space<vmem>>, %arg3: memref<32x1xf32, #tpu.memory_space<vmem>>, %arg4: memref<32x1xf32, #tpu.memory_space<vmem>>, %arg5: memref<1x32x256xf32, #tpu.memory_space<vmem>>) attributes {dimension_semantics = [#tpu.dimension_semantics<parallel>, #tpu.dimension_semantics<parallel>], iteration_bounds = array<i64: 2, 1>, scalar_prefetch = 0 : i64, scratch_operands = 0 : i64, tpu.core_type = #tpu.core_type<tc>, window_params = [{transform_indices = @transform_0, window_bounds = array<i64: 1, 32, 256>}, {pipeline_mode = #tpu.pipeline_mode<synchronous>, transform_indices = @transform_1, window_bounds = array<i64: 32, 1>}, {pipeline_mode = #tpu.pipeline_mode<synchronous>, transform_indices = @transform_2, window_bounds = array<i64: 32, 1>}, {transform_indices = @transform_3, window_bounds = array<i64: 1, 32, 256>}]} {
    %c0 = arith.constant 0 : index
    %c0_0 = arith.constant 0 : index
    %c0_1 = arith.constant 0 : index
    %0 = vector.load %arg2[%c0, %c0_0, %c0_1] : memref<1x32x256xf32, #tpu.memory_space<vmem>>, vector<1x32x256xf32>
    %cst = arith.constant dense<0.000000e+00> : vector<1x256xf32>
    %1 = vector.multi_reduction <add>, %0, %cst [1] : vector<1x32x256xf32> to vector<1x256xf32>
    %2 = vector.shape_cast %1 : vector<1x256xf32> to vector<1x1x256xf32>
    %cst_2 = arith.constant 3.125000e-02 : f32
    %3 = vector.broadcast %cst_2 : f32 to vector<1x1x256xf32>
    %4 = arith.mulf %2, %3 : vector<1x1x256xf32>
    %5 = vector.broadcast %4 : vector<1x1x256xf32> to vector<1x32x256xf32>
    %6 = arith.subf %0, %5 : vector<1x32x256xf32>
    %7 = arith.mulf %6, %6 : vector<1x32x256xf32>
    %cst_3 = arith.constant dense<0.000000e+00> : vector<1x256xf32>
    %8 = vector.multi_reduction <add>, %7, %cst_3 [1] : vector<1x32x256xf32> to vector<1x256xf32>
    %9 = vector.shape_cast %8 : vector<1x256xf32> to vector<1x1x256xf32>
    %cst_4 = arith.constant 3.125000e-02 : f32
    %10 = vector.broadcast %cst_4 : f32 to vector<1x1x256xf32>
    %11 = arith.mulf %9, %10 : vector<1x1x256xf32>
    %12 = math.sqrt %11 : vector<1x1x256xf32>
    %cst_5 = arith.constant 9.99999974E-6 : f32
    %13 = vector.broadcast %cst_5 : f32 to vector<1x1x256xf32>
    %14 = arith.addf %12, %13 : vector<1x1x256xf32>
    %15 = tpu.reciprocal %14 : vector<1x1x256xf32> -> vector<1x1x256xf32>
    %16 = vector.broadcast %15 : vector<1x1x256xf32> to vector<1x32x256xf32>
    %17 = arith.mulf %6, %16 : vector<1x32x256xf32>
    %c0_6 = arith.constant 0 : index
    %c0_7 = arith.constant 0 : index
    %18 = vector.load %arg3[%c0_6, %c0_7] : memref<32x1xf32, #tpu.memory_space<vmem>>, vector<32x1xf32>
    %19 = vector.shape_cast %18 : vector<32x1xf32> to vector<1x32x1xf32>
    %20 = vector.broadcast %19 : vector<1x32x1xf32> to vector<1x32x256xf32>
    %21 = arith.mulf %17, %20 : vector<1x32x256xf32>
    %c0_8 = arith.constant 0 : index
    %c0_9 = arith.constant 0 : index
    %22 = vector.load %arg4[%c0_8, %c0_9] : memref<32x1xf32, #tpu.memory_space<vmem>>, vector<32x1xf32>
    %23 = vector.shape_cast %22 : vector<32x1xf32> to vector<1x32x1xf32>
    %24 = vector.broadcast %23 : vector<1x32x1xf32> to vector<1x32x256xf32>
    %25 = arith.addf %21, %24 : vector<1x32x256xf32>
    %c0_10 = arith.constant 0 : index
    %c0_11 = arith.constant 0 : index
    %c0_12 = arith.constant 0 : index
    %26 = vector.load %arg5[%c0_10, %c0_11, %c0_12] : memref<1x32x256xf32, #tpu.memory_space<vmem>>, vector<1x32x256xf32>
    tpu.vector_store %arg5[%c0_10, %c0_11, %c0_12], %25 {strides = array<i32>} : memref<1x32x256xf32, #tpu.memory_space<vmem>>, vector<1x32x256xf32>,
    return
  }
  func.func @transform_0(%arg0: i32, %arg1: i32) -> (i32, i32, i32) {
    %c0_i32 = arith.constant 0 : i32
    %c0_i32_0 = arith.constant 0 : i32
    return %arg0, %c0_i32, %arg1 : i32, i32, i32
  }
  func.func @transform_1(%arg0: i32, %arg1: i32) -> (i32, i32) {
    %c0_i32 = arith.constant 0 : i32
    %c0_i32_0 = arith.constant 0 : i32
    %c0_i32_1 = arith.constant 0 : i32
    return %c0_i32, %c0_i32_0 : i32, i32
  }
  func.func @transform_2(%arg0: i32, %arg1: i32) -> (i32, i32) {
    %c0_i32 = arith.constant 0 : i32
    %c0_i32_0 = arith.constant 0 : i32
    %c0_i32_1 = arith.constant 0 : i32
    return %c0_i32, %c0_i32_0 : i32, i32
  }
  func.func @transform_3(%arg0: i32, %arg1: i32) -> (i32, i32, i32) {
    %c0_i32 = arith.constant 0 : i32
    %c0_i32_0 = arith.constant 0 : i32
    return %arg0, %c0_i32, %arg1 : i32, i32, i32
  }
}

</mosaic_0001>

<llo_original>
// kernel: tpu_custom_call.1
$region0: #{tpu_custom_call.1}
  #allocation0 [shape = 'u32[]', space=smem, size = 0x4, offset = 0x4, fixed_abs, tag = 'smem constant byte address 0x4 - core index']
  #allocation1 [shape = 'u32[144,128]{1,0:T(1,128)}', space=vmem, size = 0x12000, scoped, tag = 'internal scratch']
  %s0 = inlined_call_operand.hbm [shape: f32[2,32,256], index: 0, kind: input, shape index: {}]
  %s1 = inlined_call_operand.vmem [shape: f32[32,1], index: 1, kind: input, shape index: {}]
  %s2 = inlined_call_operand.vmem [shape: f32[32,1], index: 2, kind: input, shape index: {}]
  %s3 = inlined_call_operand.hbm [shape: f32[2,32,256], index: 3, kind: output, shape index: {}]
  %s4 = sld [smem:[#allocation0]]
  $region49: #{tpu_custom_call.1} parent=0
    _
  %s6 = ssub.s32 1, %s4
  %s7 = scalar_select 0, %s6, %s4
  $region1: #{tpu_custom_call.1} parent=0
    #allocation2 [shape = 'u8[65536]{0}', space=vmem, size = 0x10000, scoped, tag = 'input window, operand 0']
    #allocation3 [shape = 's32[2]{0}', space=sflag, size = 0x8, scoped, tag = 'scoped memory for tpu_custom_call.1']
    #allocation4 [shape = 's32[2]{0}', space=sflag, size = 0x8, scoped, tag = 'scoped memory for tpu_custom_call.1']
    #allocation5 [shape = 'u8[65536]{0}', space=vmem, size = 0x10000, scoped, tag = 'output window, operand 0']
    %8 = vsyncpa [#allocation3], 0
    %s9 = scalar_lea.sflag [#allocation3], 1
    %10 = vsyncpa %s9, 0
    %11 = vsyncpa [#allocation4], 0
    %s12 = scalar_lea.sflag [#allocation4], 1
    %13 = vsyncpa %s12, 0
    loop: start=0, step=1, limit=4
    $region2: #{tpu_custom_call.1} parent=1 // loop_pre_header
      _
    $region3: #{tpu_custom_call.1} parent=1 // loop_header
      %s15 = sphi 0, %s19
      %p16 = scmp.ge.s32.totalorder %s15, 4
      %s22 = sphi 0, %s34
      %s23 = sphi 0, %s30
      %s24 = sphi 0, %s22
      %s25 = sphi 0, %s23
      %s26 = sphi 0, %s24
      %s27 = sphi 0, %s25
      %s39 = sphi 0, %s41
      %s42 = sphi 0, %s39
      %s43 = sphi 0, %s42
      %s59 = sphi 0, %s43
      %s63 = sphi 0, %s63
      %s65 = sphi 0, %s63
      %s66 = sphi 0, %s65
      %s80 = sphi 0, %s66
      %s84 = sphi 0, %s84
      %s86 = sphi 0, %s84
      %s87 = sphi 0, %s86
      %s101 = sphi 0, %s87
      %s109 = sphi 0, %s111
      %s112 = sphi 0, %s109
      %s113 = sphi 0, %s112
      %s129 = sphi 0, %s113
    $region4: #{tpu_custom_call.1} parent=1 // loop_header_branch
      %18 = sbr.rel (%p16) target = $region8
    $region5: #{tpu_custom_call.1} parent=1 // loop_body
      %s20 = ssub.s32 %s15, 1
      %s21 = ssub.s32 %s15, 2
      %s28 = sadd.s32 1, %s23
      %p29 = scmp.ge.s32.totalorder %s28, 1
      %s30 = scalar_select %p29, 0, %s28
      %s31 = sadd.s32 1, %s22
      %s32 = scalar_select %p29, %s31, %s22
      %p33 = scmp.ge.s32.totalorder %s32, 2
      %s34 = scalar_select %p33, 0, %s32
      %s35 = ssub.s32 %s22, %s34
      %s36 = ssub.s32 %s23, %s30
      %s37 = sor.u32 %s35, %s36
      %p38 = scmp.eq.s32.totalorder %s37, 0
      %s40 = sadd.s32 %s39, 1
      %s41 = scalar_select %p38, %s39, %s40
      %p44 = pneg %p38
      %p45 = scmp.eq.s32.totalorder %s15, 1
      %p46 = por %p44, %p45
      %p47 = scmp.ne.s32.totalorder %s39, %s42
      %p48 = scmp.eq.s32.totalorder %s15, 0
      %p49 = por %p47, %p48
      %p50 = scmp.ne.s32.totalorder %s39, %s42
      %p51 = scmp.eq.s32.totalorder %s20, 1
      %p52 = por %p50, %p51
      %p53 = scmp.ne.s32.totalorder %s42, %s43
      %p54 = scmp.eq.s32.totalorder %s20, 0
      %p55 = por %p53, %p54
      %p56 = scmp.ne.s32.totalorder %s42, %s43
      %p57 = scmp.eq.s32.totalorder %s21, 1
      %p58 = por %p56, %p57
      %p60 = scmp.ne.s32.totalorder %s43, %s59
      %p61 = scmp.eq.s32.totalorder %s21, 0
      %p62 = por %p60, %p61
      %s64 = sadd.s32 %s63, 1
      %p67 = scmp.eq.s32.totalorder %s15, 1
      %p68 = scmp.ne.s32.totalorder %s63, %s65
      %p69 = scmp.eq.s32.totalorder %s15, 0
      %p70 = por %p68, %p69
      %p71 = scmp.ne.s32.totalorder %s63, %s65
      %p72 = scmp.eq.s32.totalorder %s20, 1
      %p73 = por %p71, %p72
      %p74 = scmp.ne.s32.totalorder %s65, %s66
      %p75 = scmp.eq.s32.totalorder %s20, 0
      %p76 = por %p74, %p75
      %p77 = scmp.ne.s32.totalorder %s65, %s66
      %p78 = scmp.eq.s32.totalorder %s21, 1
      %p79 = por %p77, %p78
      %p81 = scmp.ne.s32.totalorder %s66, %s80
      %p82 = scmp.eq.s32.totalorder %s21, 0
      %p83 = por %p81, %p82
      %s85 = sadd.s32 %s84, 1
      %p88 = scmp.eq.s32.totalorder %s15, 1
      %p89 = scmp.ne.s32.totalorder %s84, %s86
      %p90 = scmp.eq.s32.totalorder %s15, 0
      %p91 = por %p89, %p90
      %p92 = scmp.ne.s32.totalorder %s84, %s86
      %p93 = scmp.eq.s32.totalorder %s20, 1
      %p94 = por %p92, %p93
      %p95 = scmp.ne.s32.totalorder %s86, %s87
      %p96 = scmp.eq.s32.totalorder %s20, 0
      %p97 = por %p95, %p96
      %p98 = scmp.ne.s32.totalorder %s86, %s87
      %p99 = scmp.eq.s32.totalorder %s21, 1
      %p100 = por %p98, %p99
      %p102 = scmp.ne.s32.totalorder %s87, %s101
      %p103 = scmp.eq.s32.totalorder %s21, 0
      %p104 = por %p102, %p103
      %s105 = ssub.s32 %s22, %s34
      %s106 = ssub.s32 %s23, %s30
      %s107 = sor.u32 %s105, %s106
      %p108 = scmp.eq.s32.totalorder %s107, 0
      %s110 = sadd.s32 %s109, 1
      %s111 = scalar_select %p108, %s109, %s110
      %p114 = pneg %p108
      %p115 = scmp.eq.s32.totalorder %s15, 1
      %p116 = por %p114, %p115
      %p117 = scmp.ne.s32.totalorder %s109, %s112
      %p118 = scmp.eq.s32.totalorder %s15, 0
      %p119 = por %p117, %p118
      %p120 = scmp.ne.s32.totalorder %s109, %s112
      %p121 = scmp.eq.s32.totalorder %s20, 1
      %p122 = por %p120, %p121
      %p123 = scmp.ne.s32.totalorder %s112, %s113
      %p124 = scmp.eq.s32.totalorder %s20, 0
      %p125 = por %p123, %p124
      %p126 = scmp.ne.s32.totalorder %s112, %s113
      %p127 = scmp.eq.s32.totalorder %s21, 1
      %p128 = por %p126, %p127
      %p130 = scmp.ne.s32.totalorder %s113, %s129
      %p131 = scmp.eq.s32.totalorder %s21, 0
      %p132 = por %p130, %p131
      %p133 = scmp.le.s32.totalorder 1, %s15
      %p134 = scmp.lt.s32.totalorder %s15, 3
      %p135 = pnand %p133, %p134
      %p136 = pneg %p135
      // Predicated region
      $region9: #{tpu_custom_call.1} parent=5 // pred_check
        _
      $region10: #{tpu_custom_call.1} parent=5 // pred_check_branch
        %138 = sbr.rel (%p135) target = $region12
      $region11: #{tpu_custom_call.1} parent=5 // pred_region
        %s139 = ssub.s32 %s15, 1
        // Predicated region
        $region13: #{tpu_custom_call.1} parent=11 // pred_check
          %p140 = pneg %p76
        $region14: #{tpu_custom_call.1} parent=11 // pred_check_branch
          %142 = sbr.rel (%p140) target = $region16
        $region15: #{tpu_custom_call.1} parent=11 // pred_region
          _
        $region16: #{tpu_custom_call.1} parent=11 // pred_fallthru
          _
        // Predicated region
        $region17: #{tpu_custom_call.1} parent=11 // pred_check
          %p143 = pneg %p97
        $region18: #{tpu_custom_call.1} parent=11 // pred_check_branch
          %145 = sbr.rel (%p143) target = $region20
        $region19: #{tpu_custom_call.1} parent=11 // pred_region
          _
        $region20: #{tpu_custom_call.1} parent=11 // pred_fallthru
          _
      $region12: #{tpu_custom_call.1} parent=5 // pred_fallthru
        _
      %p146 = scmp.lt.s32.totalorder %s15, 2
      // Predicated region
      $region21: #{tpu_custom_call.1} parent=5 // pred_check
        %p147 = pneg %p146
      $region22: #{tpu_custom_call.1} parent=5 // pred_check_branch
        %149 = sbr.rel (%p147) target = $region24
      $region23: #{tpu_custom_call.1} parent=5 // pred_region
        // Predicated region
        $region25: #{tpu_custom_call.1} parent=23 // pred_check
          %p150 = pneg %p49
        $region26: #{tpu_custom_call.1} parent=23 // pred_check_branch
          %152 = sbr.rel (%p150) target = $region28
        $region27: #{tpu_custom_call.1} parent=23 // pred_region
          %s153 = sand.u32 %s39, 1
          %s154 = scalar_lea.sflag [#allocation3], %s153
          %s155 = sand.u32 %s39, 1
          %s156 = smul.addr %s155, 64
          %s157 = scalar_lea.vmem [#allocation2], %s156
          %s158 = smul.u32 2, %s23
          %s160 = ssub.s32 1024, 1024
          %161 = vsyncadd %s154, %s160
          %s162 = smul.addr %s22, 8
          %s163 = sadd.s32 %s158, %s162
          %s164 = smul.addr %s163, 128
          %s165 = scalar_lea.hbm %s0, %s164
          %s166 = sshll.u32 %s157, 4
          %s167 = int_to_ptr.vmem [resolvable:$true] %s166
          %172 = dma.hbm_to_vmem [thread:$0]  %s165, 1024, %s167, %s154, 256, 256, 16
        $region28: #{tpu_custom_call.1} parent=23 // pred_fallthru
          _
      $region24: #{tpu_custom_call.1} parent=5 // pred_fallthru
        _
      %p173 = scmp.le.s32.totalorder 1, %s15
      %p174 = scmp.lt.s32.totalorder %s15, 3
      %p175 = pnand %p173, %p174
      %p176 = pneg %p175
      // Predicated region
      $region29: #{tpu_custom_call.1} parent=5 // pred_check
        _
      $region30: #{tpu_custom_call.1} parent=5 // pred_check_branch
        %178 = sbr.rel (%p175) target = $region32
      $region31: #{tpu_custom_call.1} parent=5 // pred_region
        %s179 = ssub.s32 %s15, 1
        %s180 = sand.u32 %s42, 1
        %s181 = scalar_lea.sflag [#allocation3], %s180
        %s182 = sand.u32 %s42, 1
        %s183 = smul.addr %s182, 64
        %s184 = scalar_lea.vmem [#allocation2], %s183
        // Predicated region
        $region33: #{tpu_custom_call.1} parent=31 // pred_check
          %p185 = pneg %p55
        $region34: #{tpu_custom_call.1} parent=31 // pred_check_branch
          %187 = sbr.rel (%p185) target = $region36
        $region35: #{tpu_custom_call.1} parent=31 // pred_region
          %188 = dma.done %s181, 1024
        $region36: #{tpu_custom_call.1} parent=31 // pred_fallthru
          _
        %s189 = sand.u32 %s42, 1
        %s190 = scalar_lea.sflag [#allocation3], %s189
        %s191 = sand.u32 %s42, 1
        %s192 = smul.addr %s191, 64
        %s193 = scalar_lea.vmem [#allocation2], %s192
        %p194 = pneg %p55
        %p195 = pneg %p52
        %p196 = pneg %p76
        %p197 = pneg %p73
        %p198 = pneg %p97
        %p199 = pneg %p94
        %p200 = pneg %p125
        %p201 = pneg %p122
        %s202 = sand.u32 %s112, 1
        %s203 = scalar_lea.sflag [#allocation4], %s202
        %s204 = sand.u32 %s112, 1
        %s205 = smul.addr %s204, 64
        %s206 = scalar_lea.vmem [#allocation5], %s205
        %s207 = smul.u32 2, %s25
        %s208 = smul.u32 2, %s25
        %v209 = vld [vmem:[%s184] sm:$0xff]
        %v210 = vld [vmem:[%s184 + $0x8] sm:$0xff]
        %v211 = vld [vmem:[%s184 + $0x10] sm:$0xff]
        %v212 = vld [vmem:[%s184 + $0x18] sm:$0xff]
        %v213 = vld [vmem:[%s184 + $0x20] sm:$0xff]
        %v214 = vld [vmem:[%s184 + $0x28] sm:$0xff]
        %v215 = vld [vmem:[%s184 + $0x30] sm:$0xff]
        %v216 = vld [vmem:[%s184 + $0x38] sm:$0xff]
        %v217 = vadd.f32 %v209, %v211
        %v218 = vadd.f32 %v217, %v213
        %v219 = vadd.f32 %v218, %v215
        %v220 = vrot.slane %v219, 4
        %v221 = vadd.f32 %v219, %v220
        %v222 = vrot.slane %v221, 2
        %v223 = vadd.f32 %v221, %v222
        %v224 = vrot.slane %v223, 1
        %v225 = vadd.f32 %v223, %v224
        %v226 = vadd.f32 %v210, %v212
        %v227 = vadd.f32 %v226, %v214
        %v228 = vadd.f32 %v227, %v216
        %v229 = vrot.slane %v228, 4
        %v230 = vadd.f32 %v228, %v229
        %v231 = vrot.slane %v230, 2
        %v232 = vadd.f32 %v230, %v231
        %v233 = vrot.slane %v232, 1
        %v234 = vadd.f32 %v232, %v233
        %v235 = vmul.f32 %v225, 0.03125
        %v236 = vmul.f32 %v234, 0.03125
        %v237 = vsub.f32 %v209, %v235
        %v238 = vsub.f32 %v210, %v236
        %v239 = vsub.f32 %v211, %v235
        %v240 = vsub.f32 %v212, %v236
        %v241 = vsub.f32 %v213, %v235
        %v242 = vsub.f32 %v214, %v236
        %v243 = vsub.f32 %v215, %v235
        %v244 = vsub.f32 %v216, %v236
        %v245 = vmul.f32 %v237, %v237
        %v246 = vmul.f32 %v238, %v238
        %v247 = vmul.f32 %v239, %v239
        %v248 = vmul.f32 %v240, %v240
        %v249 = vmul.f32 %v241, %v241
        %v250 = vmul.f32 %v242, %v242
        %v251 = vmul.f32 %v243, %v243
        %v252 = vmul.f32 %v244, %v244
        %v253 = vadd.f32 %v245, %v247
        %v254 = vadd.f32 %v253, %v249
        %v255 = vadd.f32 %v254, %v251
        %v256 = vrot.slane %v255, 4
        %v257 = vadd.f32 %v255, %v256
        %v258 = vrot.slane %v257, 2
        %v259 = vadd.f32 %v257, %v258
        %v260 = vrot.slane %v259, 1
        %v261 = vadd.f32 %v259, %v260
        %v262 = vadd.f32 %v246, %v248
        %v263 = vadd.f32 %v262, %v250
        %v264 = vadd.f32 %v263, %v252
        %v265 = vrot.slane %v264, 4
        %v266 = vadd.f32 %v264, %v265
        %v267 = vrot.slane %v266, 2
        %v268 = vadd.f32 %v266, %v267
        %v269 = vrot.slane %v268, 1
        %v270 = vadd.f32 %v268, %v269
        %v271 = vmul.f32 %v261, 0.03125
        %v272 = vmul.f32 %v270, 0.03125
        %v273 = vrsqrt.pop %v271
        %v274 = vmul.f32 %v271, %v273
        %vm275 = vcmp.eq.f32.partialorder %v271, inf
        %v276 = vsel %vm275, %v271, %v274
        %vm277 = vcmp.eq.f32.partialorder %v271, 0.0
        %v278 = vand.u32 %v271, 2147483648
        %v279 = vsel %vm277, %v278, %v276
        %v280 = vrsqrt.pop %v272
        %v281 = vmul.f32 %v272, %v280
        %vm282 = vcmp.eq.f32.partialorder %v272, inf
        %v283 = vsel %vm282, %v272, %v281
        %vm284 = vcmp.eq.f32.partialorder %v272, 0.0
        %v285 = vand.u32 %v272, 2147483648
        %v286 = vsel %vm284, %v285, %v283
        %v287 = vadd.f32 %v279, 1e-05
        %v288 = vadd.f32 %v286, 1e-05
        %v289 = vrcp.pop %v287
        %v290 = vrcp.pop %v288
        %v291 = vmul.f32 %v237, %v289
        %v292 = vmul.f32 %v238, %v290
        %v293 = vmul.f32 %v239, %v289
        %v294 = vmul.f32 %v240, %v290
        %v295 = vmul.f32 %v241, %v289
        %v296 = vmul.f32 %v242, %v290
        %v297 = vmul.f32 %v243, %v289
        %v298 = vmul.f32 %v244, %v290
        %v299 = vld [vmem:[%s1] sm:$0xff]
        %v300 = vld [vmem:[%s1 + $0x8] sm:$0xff]
        %v301 = vld [vmem:[%s1 + $0x10] sm:$0xff]
        %v302 = vld [vmem:[%s1 + $0x18] sm:$0xff]
        %304 = vset.pattern.permute.xlu0 0
        %305 = vperm.xlu0 %304, %v299
        %v306 = vpop.permute.xlu0 %305
        %309 = vset.pattern.permute.xlu0 0
        %310 = vperm.xlu0 %309, %v300
        %v311 = vpop.permute.xlu0 %310
        %314 = vset.pattern.permute.xlu0 0
        %315 = vperm.xlu0 %314, %v301
        %v316 = vpop.permute.xlu0 %315
        %319 = vset.pattern.permute.xlu0 0
        %320 = vperm.xlu0 %319, %v302
        %v321 = vpop.permute.xlu0 %320
        %v323 = vmul.f32 %v291, %v306
        %v324 = vmul.f32 %v292, %v306
        %v325 = vmul.f32 %v293, %v311
        %v326 = vmul.f32 %v294, %v311
        %v327 = vmul.f32 %v295, %v316
        %v328 = vmul.f32 %v296, %v316
        %v329 = vmul.f32 %v297, %v321
        %v330 = vmul.f32 %v298, %v321
        %v331 = vld [vmem:[%s2] sm:$0xff]
        %v332 = vld [vmem:[%s2 + $0x8] sm:$0xff]
        %v333 = vld [vmem:[%s2 + $0x10] sm:$0xff]
        %v334 = vld [vmem:[%s2 + $0x18] sm:$0xff]
        %336 = vset.pattern.permute.xlu0 0
        %337 = vperm.xlu0 %336, %v331
        %v338 = vpop.permute.xlu0 %337
        %341 = vset.pattern.permute.xlu0 0
        %342 = vperm.xlu0 %341, %v332
        %v343 = vpop.permute.xlu0 %342
        %346 = vset.pattern.permute.xlu0 0
        %347 = vperm.xlu0 %346, %v333
        %v348 = vpop.permute.xlu0 %347
        %351 = vset.pattern.permute.xlu0 0
        %352 = vperm.xlu0 %351, %v334
        %v353 = vpop.permute.xlu0 %352
        %v355 = vadd.f32 %v323, %v338
        %v356 = vadd.f32 %v324, %v338
        %v357 = vadd.f32 %v325, %v343
        %v358 = vadd.f32 %v326, %v343
        %v359 = vadd.f32 %v327, %v348
        %v360 = vadd.f32 %v328, %v348
        %v361 = vadd.f32 %v329, %v353
        %v362 = vadd.f32 %v330, %v353
        %363 = vst [vmem:[%s206] sm:$0xff] %v355
        %364 = vst [vmem:[%s206 + $0x8] sm:$0xff] %v356
        %365 = vst [vmem:[%s206 + $0x10] sm:$0xff] %v357
        %366 = vst [vmem:[%s206 + $0x18] sm:$0xff] %v358
        %367 = vst [vmem:[%s206 + $0x20] sm:$0xff] %v359
        %368 = vst [vmem:[%s206 + $0x28] sm:$0xff] %v360
        %369 = vst [vmem:[%s206 + $0x30] sm:$0xff] %v361
        %370 = vst [vmem:[%s206 + $0x38] sm:$0xff] %v362
        %s371 = sand.u32 %s112, 1
        %s372 = scalar_lea.sflag [#allocation4], %s371
        %s373 = sand.u32 %s112, 1
        %s374 = smul.addr %s373, 64
        %s375 = scalar_lea.vmem [#allocation5], %s374
        // Predicated region
        $region37: #{tpu_custom_call.1} parent=31 // pred_check
          %p376 = pneg %p122
        $region38: #{tpu_custom_call.1} parent=31 // pred_check_branch
          %378 = sbr.rel (%p376) target = $region40
        $region39: #{tpu_custom_call.1} parent=31 // pred_region
          %s379 = smul.u32 2, %s25
          %s381 = ssub.s32 1024, 1024
          %382 = vsyncadd %s372, %s381
          %s383 = smul.addr %s24, 8
          %s384 = sadd.s32 %s379, %s383
          %s385 = smul.addr %s384, 128
          %s386 = scalar_lea.hbm %s3, %s385
          %s387 = sshll.u32 %s375, 4
          %s388 = int_to_ptr.vmem [resolvable:$true] %s387
          %393 = dma.vmem_to_hbm [thread:$0]  %s388, 1024, %s386, %s372, 256, 256, 16
        $region40: #{tpu_custom_call.1} parent=31 // pred_fallthru
          _
      $region32: #{tpu_custom_call.1} parent=5 // pred_fallthru
        _
      %p394 = scmp.le.s32.totalorder 2, %s15
      // Predicated region
      $region41: #{tpu_custom_call.1} parent=5 // pred_check
        %p395 = pneg %p394
      $region42: #{tpu_custom_call.1} parent=5 // pred_check_branch
        %397 = sbr.rel (%p395) target = $region44
      $region43: #{tpu_custom_call.1} parent=5 // pred_region
        %s398 = ssub.s32 %s15, 2
        // Predicated region
        $region45: #{tpu_custom_call.1} parent=43 // pred_check
          %p399 = pneg %p128
        $region46: #{tpu_custom_call.1} parent=43 // pred_check_branch
          %401 = sbr.rel (%p399) target = $region48
        $region47: #{tpu_custom_call.1} parent=43 // pred_region
          %s402 = sand.u32 %s113, 1
          %s403 = scalar_lea.sflag [#allocation4], %s402
          %s404 = sand.u32 %s113, 1
          %s405 = smul.addr %s404, 64
          %s406 = scalar_lea.vmem [#allocation5], %s405
          %407 = dma.done %s403, 1024
        $region48: #{tpu_custom_call.1} parent=43 // pred_fallthru
          _
      $region44: #{tpu_custom_call.1} parent=5 // pred_fallthru
        _
    $region6: #{tpu_custom_call.1} parent=1 // loop_footer
      %s19 = sadd.s32 1, %s15
    $region7: #{tpu_custom_call.1} parent=1 // loop_footer_branch
      %14 = sbr.rel target = $region3
    $region8: #{tpu_custom_call.1} parent=1 // loop_exit
      _
    %408 = vsyncpa [#allocation3], 1
    %s409 = scalar_lea.sflag [#allocation3], 1
    %410 = vsyncpa %s409, 1
    %411 = vsyncpa [#allocation4], 1
    %s412 = scalar_lea.sflag [#allocation4], 1
    %413 = vsyncpa %s412, 1

</llo_original>
